<compile_context>
chip_gen: v6e
topology: v6e:2x2x1
jax: 0.10.0
libtpu: 0.0.40
codegen_flags: <defaults>
</compile_context>

<pallas_src>
import jax
import jax.numpy as jnp
from jax.experimental import pallas as pl
from jax.experimental.pallas import tpu as pltpu

NUM_JOINTS = 24
# SMPL kintree parents (kintree_table[0]); root parent is unused.
KINTREE_PARENTS = [-1, 0, 0, 0, 1, 2, 3, 4, 5, 6, 7, 8, 9, 9, 9, 12, 13, 14,
                   16, 17, 18, 19, 20, 21]


def _round_up(x, m):
    return (x + m - 1) // m * m


def _cdiv(a, b):
    return -(-a // b)


# ---------------------------------------------------------------------------
# Plain-JAX glue: Rodrigues, kinematic chain, inverse-rotation packing.
# ---------------------------------------------------------------------------
def batch_rodrigues(axisang):
    """(M, 3) axis-angle -> (M, 3, 3) rotations (manopth quaternion formulation)."""
    angle = jnp.linalg.norm(axisang + 1e-8, axis=1, keepdims=True)
    axis = axisang / angle
    half = angle * 0.5
    v_cos, v_sin = jnp.cos(half), jnp.sin(half)
    quat = jnp.concatenate([v_cos, v_sin * axis], axis=1)
    quat = quat / jnp.linalg.norm(quat, axis=1, keepdims=True)
    w, x, y, z = quat[:, 0], quat[:, 1], quat[:, 2], quat[:, 3]
    w2, x2, y2, z2 = w * w, x * x, y * y, z * z
    wx, wy, wz = w * x, w * y, w * z
    xy, xz, yz = x * y, x * z, y * z
    rot = jnp.stack([
        w2 + x2 - y2 - z2, 2 * xy - 2 * wz, 2 * wy + 2 * xz,
        2 * wz + 2 * xy, w2 - x2 + y2 - z2, 2 * yz - 2 * wx,
        2 * xz - 2 * wy, 2 * wx + 2 * yz, w2 - x2 - y2 + z2,
    ], axis=1)
    return rot.reshape(-1, 3, 3)


def compute_smpl_skeleton(pose):
    """(B, 72) axis-angle -> global joint rotations (B, 24, 3, 3) along the kintree.

    NOTE: the reference also computes th_j = J_regressor @ v_template here; it is
    dead code for the rotation-only forward, so it is removed (no HBM traffic).
    """
    B = pose.shape[0]
    rotmats = batch_rodrigues(pose.reshape(B * NUM_JOINTS, 3)).reshape(
        B, NUM_JOINTS, 3, 3)
    results = [rotmats[:, 0]]
    for i in range(1, NUM_JOINTS):
        parent = KINTREE_PARENTS[i]
        results.append(jnp.matmul(results[parent], rotmats[:, i],
                                  precision=jax.lax.Precision.HIGHEST))
    return jnp.stack(results, axis=1)  # (B, 24, 3, 3)


def build_rotinv_flat(pose):
    """(B, 72) -> (B, 9, 24) flattened inverse global rotations."""
    B = pose.shape[0]
    rots = compute_smpl_skeleton(pose)            # (B, 24, 3, 3)
    # Inverse of a chained rotation == transpose (orthonormal) -> exact, replaces
    # the reference's general 3x3 .inverse().
    rot_inv = jnp.swapaxes(rots, -1, -2)          # (B, 24, 3, 3)
    # Match torch: (B,3,3,24).view(B, 9, 24)  ->  row index = 3*i + j.
    return jnp.transpose(rot_inv, (0, 2, 3, 1)).reshape(B, 9, NUM_JOINTS)


# ---------------------------------------------------------------------------
# Pallas kernel: blend inverse rotations with skinning weights, rotate normals.
# ---------------------------------------------------------------------------
def inv_skin_kernel(rotinv_ref, w_ref, normals_ref, out_ref):
    a = rotinv_ref[0]                         # (9, 24)  f32 inverse rotations
    w = w_ref[0].astype(jnp.float32)          # (24, TN) bf16 -> f32 in-register
    nrm = normals_ref[0]                      # (3, TN)  f32 posed normals
    # Blended inverse rotation per point: nT[3*i+j, n] = sum_k a[3*i+j, k] * w[k, n]
    nT = jnp.dot(a, w, preferred_element_type=jnp.float32)   # MXU, (9, TN)
    n0 = nrm[0:1, :]
    n1 = nrm[1:2, :]
    n2 = nrm[2:3, :]
    # out[i, n] = sum_j nT[3*i+j, n] * nrm[j, n]; store each row directly
    # (no concatenate -> no sublane shuffle, one store per output row).
    for i in range(3):
        row = (nT[3 * i:3 * i + 1, :] * n0
               + nT[3 * i + 1:3 * i + 2, :] * n1
               + nT[3 * i + 2:3 * i + 3, :] * n2)
        out_ref[0, i:i + 1, :] = row.astype(out_ref.dtype)


def _choose_tiling(batch, n, max_tn=2048):
    """Pick a lane-dense tile width and padded point count.

    Uses tiles as large as possible (<= max_tn) for HBM-roofline efficiency while
    keeping >= 2 parallel grid steps so both v7x TensorCores get work.
    """
    n_pad = _round_up(n, 128)
    num_tiles = max(1, _cdiv(n_pad, max_tn))
    if batch * num_tiles < 2 and n_pad >= 256:
        num_tiles = 2
    tn = _round_up(_cdiv(n_pad, num_tiles), 128)
    return tn, tn * num_tiles, num_tiles


def inv_skin_pallas(rotinv_flat, skinning_weights, normals, *,
                    weights_dtype=jnp.bfloat16, max_tn=2048):
    B, _, N = skinning_weights.shape
    tn, n_pad, num_tiles = _choose_tiling(B, N, max_tn)

    rot = rotinv_flat.astype(jnp.float32)
    w = skinning_weights.astype(weights_dtype)   # no-op if caller stores bf16
    nrm = normals.astype(jnp.float32)
    if n_pad != N:
        pad = ((0, 0), (0, 0), (0, n_pad - N))
        w = jnp.pad(w, pad)
        nrm = jnp.pad(nrm, pad)

    itemsize_w = jnp.dtype(weights_dtype).itemsize
    cost = pl.CostEstimate(
        flops=2 * B * 9 * NUM_JOINTS * n_pad + 15 * B * n_pad,
        transcendentals=0,
        bytes_accessed=(B * 9 * NUM_JOINTS * 4
                        + B * NUM_JOINTS * n_pad * itemsize_w
                        + B * 3 * n_pad * 4       # normals in
                        + B * 3 * n_pad * 4))     # output

    out = pl.pallas_call(
        inv_skin_kernel,
        out_shape=jax.ShapeDtypeStruct((B, 3, n_pad), normals.dtype),
        grid_spec=pltpu.PrefetchScalarGridSpec(
            num_scalar_prefetch=0,
            grid=(B, num_tiles),
            in_specs=[
                pl.BlockSpec((1, 9, NUM_JOINTS), lambda b, n: (b, 0, 0)),
                pl.BlockSpec((1, NUM_JOINTS, tn), lambda b, n: (b, 0, n)),
                pl.BlockSpec((1, 3, tn), lambda b, n: (b, 0, n)),
            ],
            out_specs=pl.BlockSpec((1, 3, tn), lambda b, n: (b, 0, n)),
        ),
        compiler_params=pltpu.CompilerParams(
            dimension_semantics=("parallel", "parallel")),
        cost_estimate=cost,
    )(rot, w, nrm)

    return out if n_pad == N else out[:, :, :N]


# ---------------------------------------------------------------------------
# Module forward (jitted: fuses the SMPL glue and DCEs anything unused).
# ---------------------------------------------------------------------------
@jax.jit
def inv_skin_rotation_only_forward(normals, pose, skinning_weights):
    rotinv_flat = build_rotinv_flat(pose)                       # (B, 9, 24)
    n_verts = inv_skin_pallas(rotinv_flat, skinning_weights, normals)
    return {'cano_cloth_normals': n_verts}


if __name__ == "__main__":
    key = jax.random.PRNGKey(0)
    k_pose, k_nrm, k_w = jax.random.split(key, 3)

    B, N = 2, 512  # batch, number of cloth points

    pose = 0.3 * jax.random.normal(k_pose, (B, NUM_JOINTS * 3), jnp.float32)
    normals = jax.random.normal(k_nrm, (B, 3, N), jnp.float32)
    normals = normals / jnp.linalg.norm(normals, axis=1, keepdims=True)
    sw = jax.random.uniform(k_w, (B, NUM_JOINTS, N), jnp.float32)
    sw = sw / jnp.sum(sw, axis=1, keepdims=True)
    # Store skinning weights in bf16 — they are ~80% of the kernel's HBM bytes;
    # the MXU accumulates in f32, so only the weights are quantized.
    sw_bf16 = sw.astype(jnp.bfloat16)

    out = inv_skin_rotation_only_forward(normals, pose, sw_bf16)
    n_verts = jax.block_until_ready(out['cano_cloth_normals'])
    assert n_verts.shape == (B, 3, N)
    assert n_verts.dtype == normals.dtype

    # Pure-JAX reference for the hot path (exact f32 elementwise math, using the
    # same bf16-quantized weights that the kernel consumes).
    w_q = sw_bf16.astype(jnp.float32)
    rotinv_ref = build_rotinv_flat(pose)                             # (B, 9, 24)
    nT_ref = jnp.sum(rotinv_ref[:, :, :, None] * w_q[:, None, :, :], axis=2)
    nT_ref = nT_ref.reshape(B, 3, 3, N)
    ref = jnp.sum(nT_ref * normals[:, None, :, :], axis=2)

    max_err = float(jnp.max(jnp.abs(n_verts - ref)))
    assert jnp.allclose(n_verts, ref, atol=1e-4, rtol=1e-4), max_err
    print("KERNEL_OK")
</pallas_src>

<mosaic_0001>
module attributes {stable_mosaic.version = 11 : i64} {
  func.func @inv_skin_kernel(%arg0: i32, %arg1: i32, %arg2: memref<1x9x24xf32, #tpu.memory_space<vmem>>, %arg3: memref<1x24x512xbf16, #tpu.memory_space<vmem>>, %arg4: memref<1x3x512xf32, #tpu.memory_space<vmem>>, %arg5: memref<1x3x512xf32, #tpu.memory_space<vmem>>) attributes {dimension_semantics = [#tpu.dimension_semantics<parallel>, #tpu.dimension_semantics<parallel>], iteration_bounds = array<i64: 2, 1>, scalar_prefetch = 0 : i64, scratch_operands = 0 : i64, tpu.core_type = #tpu.core_type<tc>, window_params = [{transform_indices = @transform_0, window_bounds = array<i64: 1, 9, 24>}, {transform_indices = @transform_1, window_bounds = array<i64: 1, 24, 512>}, {transform_indices = @transform_2, window_bounds = array<i64: 1, 3, 512>}, {transform_indices = @transform_3, window_bounds = array<i64: 1, 3, 512>}]} {
    %c0 = arith.constant 0 : index
    %c0_0 = arith.constant 0 : index
    %c0_1 = arith.constant 0 : index
    %0 = vector.load %arg2[%c0, %c0_0, %c0_1] : memref<1x9x24xf32, #tpu.memory_space<vmem>>, vector<1x9x24xf32>
    %1 = vector.shape_cast %0 : vector<1x9x24xf32> to vector<9x24xf32>
    %c0_2 = arith.constant 0 : index
    %c0_3 = arith.constant 0 : index
    %c0_4 = arith.constant 0 : index
    %2 = vector.load %arg3[%c0_2, %c0_3, %c0_4] : memref<1x24x512xbf16, #tpu.memory_space<vmem>>, vector<1x24x512xbf16>
    %3 = vector.shape_cast %2 : vector<1x24x512xbf16> to vector<24x512xbf16>
    %4 = arith.extf %3 : vector<24x512xbf16> to vector<24x512xf32>
    %c0_5 = arith.constant 0 : index
    %c0_6 = arith.constant 0 : index
    %c0_7 = arith.constant 0 : index
    %5 = vector.load %arg4[%c0_5, %c0_6, %c0_7] : memref<1x3x512xf32, #tpu.memory_space<vmem>>, vector<1x3x512xf32>
    %6 = vector.shape_cast %5 : vector<1x3x512xf32> to vector<3x512xf32>
    %cst = arith.constant dense<0.000000e+00> : vector<9x512xf32>
    %7 = tpu.matmul %1, %4, %cst {dimension_numbers = #tpu.dot_dimension_numbers<[1], [0], [0], [1], [0, 0, 1, 1], [], []>} : vector<9x24xf32>, vector<24x512xf32>, vector<9x512xf32> -> vector<9x512xf32>
    %8 = vector.extract_strided_slice %6 {offsets = [0, 0], sizes = [1, 512], strides = [1, 1]} : vector<3x512xf32> to vector<1x512xf32>
    %9 = vector.extract_strided_slice %6 {offsets = [1, 0], sizes = [1, 512], strides = [1, 1]} : vector<3x512xf32> to vector<1x512xf32>
    %10 = vector.extract_strided_slice %6 {offsets = [2, 0], sizes = [1, 512], strides = [1, 1]} : vector<3x512xf32> to vector<1x512xf32>
    %11 = vector.extract_strided_slice %7 {offsets = [0, 0], sizes = [1, 512], strides = [1, 1]} : vector<9x512xf32> to vector<1x512xf32>
    %12 = arith.mulf %11, %8 : vector<1x512xf32>
    %13 = vector.extract_strided_slice %7 {offsets = [1, 0], sizes = [1, 512], strides = [1, 1]} : vector<9x512xf32> to vector<1x512xf32>
    %14 = arith.mulf %13, %9 : vector<1x512xf32>
    %15 = arith.addf %12, %14 : vector<1x512xf32>
    %16 = vector.extract_strided_slice %7 {offsets = [2, 0], sizes = [1, 512], strides = [1, 1]} : vector<9x512xf32> to vector<1x512xf32>
    %17 = arith.mulf %16, %10 : vector<1x512xf32>
    %18 = arith.addf %15, %17 : vector<1x512xf32>
    %c0_8 = arith.constant 0 : index
    %c0_9 = arith.constant 0 : index
    %c0_10 = arith.constant 0 : index
    %19 = vector.load %arg5[%c0_8, %c0_9, %c0_10] : memref<1x3x512xf32, #tpu.memory_space<vmem>>, vector<1x1x512xf32>
    %20 = vector.shape_cast %19 : vector<1x1x512xf32> to vector<1x512xf32>
    %21 = vector.shape_cast %18 : vector<1x512xf32> to vector<1x1x512xf32>
    tpu.vector_store %arg5[%c0_8, %c0_9, %c0_10], %21 {strides = array<i32>} : memref<1x3x512xf32, #tpu.memory_space<vmem>>, vector<1x1x512xf32>,
    %22 = vector.extract_strided_slice %7 {offsets = [3, 0], sizes = [1, 512], strides = [1, 1]} : vector<9x512xf32> to vector<1x512xf32>
    %23 = arith.mulf %22, %8 : vector<1x512xf32>
    %24 = vector.extract_strided_slice %7 {offsets = [4, 0], sizes = [1, 512], strides = [1, 1]} : vector<9x512xf32> to vector<1x512xf32>
    %25 = arith.mulf %24, %9 : vector<1x512xf32>
    %26 = arith.addf %23, %25 : vector<1x512xf32>
    %27 = vector.extract_strided_slice %7 {offsets = [5, 0], sizes = [1, 512], strides = [1, 1]} : vector<9x512xf32> to vector<1x512xf32>
    %28 = arith.mulf %27, %10 : vector<1x512xf32>
    %29 = arith.addf %26, %28 : vector<1x512xf32>
    %c0_11 = arith.constant 0 : index
    %c1 = arith.constant 1 : index
    %c0_12 = arith.constant 0 : index
    %30 = vector.load %arg5[%c0_11, %c1, %c0_12] : memref<1x3x512xf32, #tpu.memory_space<vmem>>, vector<1x1x512xf32>
    %31 = vector.shape_cast %30 : vector<1x1x512xf32> to vector<1x512xf32>
    %32 = vector.shape_cast %29 : vector<1x512xf32> to vector<1x1x512xf32>
    tpu.vector_store %arg5[%c0_11, %c1, %c0_12], %32 {strides = array<i32>} : memref<1x3x512xf32, #tpu.memory_space<vmem>>, vector<1x1x512xf32>,
    %33 = vector.extract_strided_slice %7 {offsets = [6, 0], sizes = [1, 512], strides = [1, 1]} : vector<9x512xf32> to vector<1x512xf32>
    %34 = arith.mulf %33, %8 : vector<1x512xf32>
    %35 = vector.extract_strided_slice %7 {offsets = [7, 0], sizes = [1, 512], strides = [1, 1]} : vector<9x512xf32> to vector<1x512xf32>
    %36 = arith.mulf %35, %9 : vector<1x512xf32>
    %37 = arith.addf %34, %36 : vector<1x512xf32>
    %38 = vector.extract_strided_slice %7 {offsets = [8, 0], sizes = [1, 512], strides = [1, 1]} : vector<9x512xf32> to vector<1x512xf32>
    %39 = arith.mulf %38, %10 : vector<1x512xf32>
    %40 = arith.addf %37, %39 : vector<1x512xf32>
    %c0_13 = arith.constant 0 : index
    %c2 = arith.constant 2 : index
    %c0_14 = arith.constant 0 : index
    %41 = vector.load %arg5[%c0_13, %c2, %c0_14] : memref<1x3x512xf32, #tpu.memory_space<vmem>>, vector<1x1x512xf32>
    %42 = vector.shape_cast %41 : vector<1x1x512xf32> to vector<1x512xf32>
    %43 = vector.shape_cast %40 : vector<1x512xf32> to vector<1x1x512xf32>
    tpu.vector_store %arg5[%c0_13, %c2, %c0_14], %43 {strides = array<i32>} : memref<1x3x512xf32, #tpu.memory_space<vmem>>, vector<1x1x512xf32>,
    return
  }
  func.func @transform_0(%arg0: i32, %arg1: i32) -> (i32, i32, i32) {
    %c0_i32 = arith.constant 0 : i32
    %c0_i32_0 = arith.constant 0 : i32
    %c0_i32_1 = arith.constant 0 : i32
    return %arg0, %c0_i32, %c0_i32_0 : i32, i32, i32
  }
  func.func @transform_1(%arg0: i32, %arg1: i32) -> (i32, i32, i32) {
    %c0_i32 = arith.constant 0 : i32
    %c0_i32_0 = arith.constant 0 : i32
    return %arg0, %c0_i32, %arg1 : i32, i32, i32
  }
  func.func @transform_2(%arg0: i32, %arg1: i32) -> (i32, i32, i32) {
    %c0_i32 = arith.constant 0 : i32
    %c0_i32_0 = arith.constant 0 : i32
    return %arg0, %c0_i32, %arg1 : i32, i32, i32
  }
  func.func @transform_3(%arg0: i32, %arg1: i32) -> (i32, i32, i32) {
    %c0_i32 = arith.constant 0 : i32
    %c0_i32_0 = arith.constant 0 : i32
    return %arg0, %c0_i32, %arg1 : i32, i32, i32
  }
}

</mosaic_0001>

<llo_original>
// kernel: inv_skin_rotation_only_forward.1
$region0: #{inv_skin_rotation_only_forward.1}
  #allocation0 [shape = 'u32[]', space=smem, size = 0x4, offset = 0x4, fixed_abs, tag = 'smem constant byte address 0x4 - core index']
  #allocation1 [shape = 'u32[144,128]{1,0:T(1,128)}', space=vmem, size = 0x12000, scoped, tag = 'internal scratch']
  %s0 = inlined_call_operand.vmem [shape: f32[2,9,24], index: 0, kind: input, shape index: {}]
  %s1 = inlined_call_operand.vmem [shape: bf16[2,24,512], index: 1, kind: input, shape index: {}]
  %s2 = inlined_call_operand.vmem [shape: f32[2,3,512], index: 2, kind: input, shape index: {}]
  %s3 = inlined_call_operand.vmem [shape: f32[2,3,512], index: 3, kind: output, shape index: {}]
  %s4 = sld [smem:[#allocation0]]
  $region45: #{inv_skin_rotation_only_forward.1} parent=0
    _
  %s6 = ssub.s32 1, %s4
  %s7 = scalar_select 0, %s6, %s4
  loop: start=0, step=1, limit=4
  $region2: #{inv_skin_rotation_only_forward.1} parent=0 // loop_pre_header
    _
  $region3: #{inv_skin_rotation_only_forward.1} parent=0 // loop_header
    %s9 = sphi 0, %s13
    %p10 = scmp.ge.s32.totalorder %s9, 4
    %s16 = sphi 0, %s28
    %s17 = sphi 0, %s24
    %s18 = sphi 0, %s16
    %s19 = sphi 0, %s17
    %s20 = sphi 0, %s18
    %s21 = sphi 0, %s19
    %s31 = sphi 0, %s33
    %s34 = sphi 0, %s31
    %s35 = sphi 0, %s34
    %s51 = sphi 0, %s35
    %s59 = sphi 0, %s61
    %s62 = sphi 0, %s59
    %s63 = sphi 0, %s62
    %s79 = sphi 0, %s63
    %s87 = sphi 0, %s89
    %s90 = sphi 0, %s87
    %s91 = sphi 0, %s90
    %s107 = sphi 0, %s91
    %s115 = sphi 0, %s117
    %s118 = sphi 0, %s115
    %s119 = sphi 0, %s118
    %s135 = sphi 0, %s119
  $region4: #{inv_skin_rotation_only_forward.1} parent=0 // loop_header_branch
    %12 = sbr.rel (%p10) target = $region8
  $region5: #{inv_skin_rotation_only_forward.1} parent=0 // loop_body
    %s14 = ssub.s32 %s9, 1
    %s15 = ssub.s32 %s9, 2
    %s22 = sadd.s32 1, %s17
    %p23 = scmp.ge.s32.totalorder %s22, 1
    %s24 = scalar_select %p23, 0, %s22
    %s25 = sadd.s32 1, %s16
    %s26 = scalar_select %p23, %s25, %s16
    %p27 = scmp.ge.s32.totalorder %s26, 2
    %s28 = scalar_select %p27, 0, %s26
    %s29 = ssub.s32 %s16, %s28
    %p30 = scmp.eq.s32.totalorder %s29, 0
    %s32 = sadd.s32 %s31, 1
    %s33 = scalar_select %p30, %s31, %s32
    %p36 = pneg %p30
    %p37 = scmp.eq.s32.totalorder %s9, 1
    %p38 = por %p36, %p37
    %p39 = scmp.ne.s32.totalorder %s31, %s34
    %p40 = scmp.eq.s32.totalorder %s9, 0
    %p41 = por %p39, %p40
    %p42 = scmp.ne.s32.totalorder %s31, %s34
    %p43 = scmp.eq.s32.totalorder %s14, 1
    %p44 = por %p42, %p43
    %p45 = scmp.ne.s32.totalorder %s34, %s35
    %p46 = scmp.eq.s32.totalorder %s14, 0
    %p47 = por %p45, %p46
    %p48 = scmp.ne.s32.totalorder %s34, %s35
    %p49 = scmp.eq.s32.totalorder %s15, 1
    %p50 = por %p48, %p49
    %p52 = scmp.ne.s32.totalorder %s35, %s51
    %p53 = scmp.eq.s32.totalorder %s15, 0
    %p54 = por %p52, %p53
    %s55 = ssub.s32 %s16, %s28
    %s56 = ssub.s32 %s17, %s24
    %s57 = sor.u32 %s55, %s56
    %p58 = scmp.eq.s32.totalorder %s57, 0
    %s60 = sadd.s32 %s59, 1
    %s61 = scalar_select %p58, %s59, %s60
    %p64 = pneg %p58
    %p65 = scmp.eq.s32.totalorder %s9, 1
    %p66 = por %p64, %p65
    %p67 = scmp.ne.s32.totalorder %s59, %s62
    %p68 = scmp.eq.s32.totalorder %s9, 0
    %p69 = por %p67, %p68
    %p70 = scmp.ne.s32.totalorder %s59, %s62
    %p71 = scmp.eq.s32.totalorder %s14, 1
    %p72 = por %p70, %p71
    %p73 = scmp.ne.s32.totalorder %s62, %s63
    %p74 = scmp.eq.s32.totalorder %s14, 0
    %p75 = por %p73, %p74
    %p76 = scmp.ne.s32.totalorder %s62, %s63
    %p77 = scmp.eq.s32.totalorder %s15, 1
    %p78 = por %p76, %p77
    %p80 = scmp.ne.s32.totalorder %s63, %s79
    %p81 = scmp.eq.s32.totalorder %s15, 0
    %p82 = por %p80, %p81
    %s83 = ssub.s32 %s16, %s28
    %s84 = ssub.s32 %s17, %s24
    %s85 = sor.u32 %s83, %s84
    %p86 = scmp.eq.s32.totalorder %s85, 0
    %s88 = sadd.s32 %s87, 1
    %s89 = scalar_select %p86, %s87, %s88
    %p92 = pneg %p86
    %p93 = scmp.eq.s32.totalorder %s9, 1
    %p94 = por %p92, %p93
    %p95 = scmp.ne.s32.totalorder %s87, %s90
    %p96 = scmp.eq.s32.totalorder %s9, 0
    %p97 = por %p95, %p96
    %p98 = scmp.ne.s32.totalorder %s87, %s90
    %p99 = scmp.eq.s32.totalorder %s14, 1
    %p100 = por %p98, %p99
    %p101 = scmp.ne.s32.totalorder %s90, %s91
    %p102 = scmp.eq.s32.totalorder %s14, 0
    %p103 = por %p101, %p102
    %p104 = scmp.ne.s32.totalorder %s90, %s91
    %p105 = scmp.eq.s32.totalorder %s15, 1
    %p106 = por %p104, %p105
    %p108 = scmp.ne.s32.totalorder %s91, %s107
    %p109 = scmp.eq.s32.totalorder %s15, 0
    %p110 = por %p108, %p109
    %s111 = ssub.s32 %s16, %s28
    %s112 = ssub.s32 %s17, %s24
    %s113 = sor.u32 %s111, %s112
    %p114 = scmp.eq.s32.totalorder %s113, 0
    %s116 = sadd.s32 %s115, 1
    %s117 = scalar_select %p114, %s115, %s116
    %p120 = pneg %p114
    %p121 = scmp.eq.s32.totalorder %s9, 1
    %p122 = por %p120, %p121
    %p123 = scmp.ne.s32.totalorder %s115, %s118
    %p124 = scmp.eq.s32.totalorder %s9, 0
    %p125 = por %p123, %p124
    %p126 = scmp.ne.s32.totalorder %s115, %s118
    %p127 = scmp.eq.s32.totalorder %s14, 1
    %p128 = por %p126, %p127
    %p129 = scmp.ne.s32.totalorder %s118, %s119
    %p130 = scmp.eq.s32.totalorder %s14, 0
    %p131 = por %p129, %p130
    %p132 = scmp.ne.s32.totalorder %s118, %s119
    %p133 = scmp.eq.s32.totalorder %s15, 1
    %p134 = por %p132, %p133
    %p136 = scmp.ne.s32.totalorder %s119, %s135
    %p137 = scmp.eq.s32.totalorder %s15, 0
    %p138 = por %p136, %p137
    %p139 = scmp.le.s32.totalorder 1, %s9
    %p140 = scmp.lt.s32.totalorder %s9, 3
    %p141 = pnand %p139, %p140
    %p142 = pneg %p141
    // Predicated region
    $region9: #{inv_skin_rotation_only_forward.1} parent=5 // pred_check
      _
    $region10: #{inv_skin_rotation_only_forward.1} parent=5 // pred_check_branch
      %144 = sbr.rel (%p141) target = $region12
    $region11: #{inv_skin_rotation_only_forward.1} parent=5 // pred_region
      %s145 = ssub.s32 %s9, 1
    $region12: #{inv_skin_rotation_only_forward.1} parent=5 // pred_fallthru
      _
    %p146 = scmp.lt.s32.totalorder %s9, 2
    // Predicated region
    $region13: #{inv_skin_rotation_only_forward.1} parent=5 // pred_check
      %p147 = pneg %p146
    $region14: #{inv_skin_rotation_only_forward.1} parent=5 // pred_check_branch
      %149 = sbr.rel (%p147) target = $region16
    $region15: #{inv_skin_rotation_only_forward.1} parent=5 // pred_region
      // Predicated region
      $region17: #{inv_skin_rotation_only_forward.1} parent=15 // pred_check
        %p150 = pneg %p41
      $region18: #{inv_skin_rotation_only_forward.1} parent=15 // pred_check_branch
        %152 = sbr.rel (%p150) target = $region20
      $region19: #{inv_skin_rotation_only_forward.1} parent=15 // pred_region
        %p153 = scmp.lt.s32.totalorder %s16, 1
        %s154 = scalar_select %p153, %s16, 1
        %s155 = smul.addr %s154, 2
        %s156 = smul.addr %s155, 8
        %s157 = scalar_lea.vmem %s0, %s156
      $region20: #{inv_skin_rotation_only_forward.1} parent=15 // pred_fallthru
        _
      // Predicated region
      $region21: #{inv_skin_rotation_only_forward.1} parent=15 // pred_check
        %p158 = pneg %p69
      $region22: #{inv_skin_rotation_only_forward.1} parent=15 // pred_check_branch
        %160 = sbr.rel (%p158) target = $region24
      $region23: #{inv_skin_rotation_only_forward.1} parent=15 // pred_region
        %s161 = smul.u32 4, %s17
        %p162 = scmp.lt.s32.totalorder %s16, 1
        %s163 = scalar_select %p162, %s16, 1
        %p164 = scmp.lt.s32.totalorder %s161, 3
        %s165 = scalar_select %p164, %s161, 3
        %s166 = smul.addr %s163, 12
        %s167 = sadd.s32 %s165, %s166
        %s168 = smul.addr %s167, 4
        %s169 = scalar_lea.vmem %s1, %s168
        %s170 = smul.u32 4, %s17
      $region24: #{inv_skin_rotation_only_forward.1} parent=15 // pred_fallthru
        _
      // Predicated region
      $region25: #{inv_skin_rotation_only_forward.1} parent=15 // pred_check
        %p171 = pneg %p97
      $region26: #{inv_skin_rotation_only_forward.1} parent=15 // pred_check_branch
        %173 = sbr.rel (%p171) target = $region28
      $region27: #{inv_skin_rotation_only_forward.1} parent=15 // pred_region
        %s174 = smul.u32 4, %s17
        %p175 = scmp.lt.s32.totalorder %s16, 1
        %s176 = scalar_select %p175, %s16, 1
        %p177 = scmp.lt.s32.totalorder %s174, 3
        %s178 = scalar_select %p177, %s174, 3
        %s179 = smul.addr %s176, 4
        %s180 = sadd.s32 %s178, %s179
        %s181 = smul.addr %s180, 4
        %s182 = scalar_lea.vmem %s2, %s181
        %s183 = smul.u32 4, %s17
      $region28: #{inv_skin_rotation_only_forward.1} parent=15 // pred_fallthru
        _
    $region16: #{inv_skin_rotation_only_forward.1} parent=5 // pred_fallthru
      _
    %p184 = scmp.le.s32.totalorder 1, %s9
    %p185 = scmp.lt.s32.totalorder %s9, 3
    %p186 = pnand %p184, %p185
    %p187 = pneg %p186
    // Predicated region
    $region29: #{inv_skin_rotation_only_forward.1} parent=5 // pred_check
      _
    $region30: #{inv_skin_rotation_only_forward.1} parent=5 // pred_check_branch
      %189 = sbr.rel (%p186) target = $region32
    $region31: #{inv_skin_rotation_only_forward.1} parent=5 // pred_region
      %s190 = ssub.s32 %s9, 1
      %p191 = scmp.lt.s32.totalorder %s18, 1
      %s192 = scalar_select %p191, %s18, 1
      %s193 = smul.addr %s192, 2
      %s194 = smul.addr %s193, 8
      %s195 = scalar_lea.vmem %s0, %s194
      %p196 = pneg %p47
      %p197 = pneg %p44
      %s198 = smul.u32 4, %s19
      %p199 = scmp.lt.s32.totalorder %s18, 1
      %s200 = scalar_select %p199, %s18, 1
      %p201 = scmp.lt.s32.totalorder %s198, 3
      %s202 = scalar_select %p201, %s198, 3
      %s203 = smul.addr %s200, 12
      %s204 = sadd.s32 %s202, %s203
      %s205 = smul.addr %s204, 4
      %s206 = scalar_lea.vmem %s1, %s205
      %p207 = pneg %p75
      %p208 = pneg %p72
      %s209 = smul.u32 4, %s19
      %p210 = scmp.lt.s32.totalorder %s18, 1
      %s211 = scalar_select %p210, %s18, 1
      %p212 = scmp.lt.s32.totalorder %s209, 3
      %s213 = scalar_select %p212, %s209, 3
      %s214 = smul.addr %s211, 4
      %s215 = sadd.s32 %s213, %s214
      %s216 = smul.addr %s215, 4
      %s217 = scalar_lea.vmem %s2, %s216
      %p218 = pneg %p103
      %p219 = pneg %p100
      %p220 = pneg %p131
      %p221 = pneg %p128
      %s222 = smul.u32 4, %s19
      %p223 = scmp.lt.s32.totalorder %s18, 1
      %s224 = scalar_select %p223, %s18, 1
      %p225 = scmp.lt.s32.totalorder %s222, 3
      %s226 = scalar_select %p225, %s222, 3
      %s227 = smul.addr %s224, 4
      %s228 = sadd.s32 %s226, %s227
      %s229 = smul.addr %s228, 4
      %s230 = scalar_lea.vmem %s3, %s229
      %p231 = scmp.lt.s32.totalorder %s18, 1
      %s232 = scalar_select %p231, %s18, 1
      %s233 = smul.addr %s232, 2
      %s234 = smul.addr %s233, 8
      %s235 = scalar_lea.vmem %s0, %s234
      %s236 = smul.u32 4, %s19
      %p237 = scmp.lt.s32.totalorder %s18, 1
      %s238 = scalar_select %p237, %s18, 1
      %p239 = scmp.lt.s32.totalorder %s236, 3
      %s240 = scalar_select %p239, %s236, 3
      %s241 = smul.addr %s238, 12
      %s242 = sadd.s32 %s240, %s241
      %s243 = smul.addr %s242, 4
      %s244 = scalar_lea.vmem %s1, %s243
      %s245 = smul.u32 4, %s19
      %s246 = smul.u32 4, %s19
      %p247 = scmp.lt.s32.totalorder %s18, 1
      %s248 = scalar_select %p247, %s18, 1
      %p249 = scmp.lt.s32.totalorder %s246, 3
      %s250 = scalar_select %p249, %s246, 3
      %s251 = smul.addr %s248, 4
      %s252 = sadd.s32 %s250, %s251
      %s253 = smul.addr %s252, 4
      %s254 = scalar_lea.vmem %s2, %s253
      %s255 = smul.u32 4, %s19
      %s256 = smul.u32 4, %s19
      %p257 = scmp.lt.s32.totalorder %s18, 1
      %s258 = scalar_select %p257, %s18, 1
      %p259 = scmp.lt.s32.totalorder %s256, 3
      %s260 = scalar_select %p259, %s256, 3
      %s261 = smul.addr %s258, 4
      %s262 = sadd.s32 %s260, %s261
      %s263 = smul.addr %s262, 4
      %s264 = scalar_lea.vmem %s3, %s263
      %s265 = smul.u32 4, %s19
      %v266 = vld [vmem:[%s235] sm:$0xff]
      %v267 = vld [vmem:[%s235 + $0x8] sm:$0x1]
      %v268 = vld [vmem:[%s244] sm:$0xff]
      %v269 = vld [vmem:[%s244 + $0x8] sm:$0xff]
      %v270 = vld [vmem:[%s244 + $0x10] sm:$0xff]
      %v271 = vld [vmem:[%s244 + $0x18] sm:$0xff]
      %v272 = vld [vmem:[%s244 + $0x20] sm:$0xff]
      %v273 = vld [vmem:[%s244 + $0x28] sm:$0xff]
      %v274 = vunpack.c.l.bf16 %v268
      %v275 = vunpack.c.h.bf16 %v268
      %v276 = vunpack.c.l.bf16 %v269
      %v277 = vunpack.c.h.bf16 %v269
      %v278 = vunpack.c.l.bf16 %v270
      %v279 = vunpack.c.h.bf16 %v270
      %v280 = vunpack.c.l.bf16 %v271
      %v281 = vunpack.c.h.bf16 %v271
      %v282 = vunpack.c.l.bf16 %v272
      %v283 = vunpack.c.h.bf16 %v272
      %v284 = vunpack.c.l.bf16 %v273
      %v285 = vunpack.c.h.bf16 %v273
      %v286 = vld [vmem:[%s254] sm:$0x77]
      %v287 = vld [vmem:[%s254 + $0x8] sm:$0x77]
      %vm288 = vcmask 195584
      %v290 = vsel %vm288, %v266, 0
      %v293 = vsel %vm288, %v267, 0
      %295 = vmatprep.subr.mxu0 0.0
      %296 = vmatpush1.msra.mxu0 0.0
      %297 = vmatprep.subr.mxu0 0.0
      %298 = vmatpush1.msra.mxu0 0.0
      %299 = vmatprep.subr.mxu0 0.0
      %300 = vmatpush1.msra.mxu0 0.0
      %301 = vmatprep.subr.mxu0 0.0
      %302 = vmatpush1.msra.mxu0 0.0
      %303 = vmatprep.subr.mxu0 0.0
      %304 = vmatpush1.msra.mxu0 0.0
      %305 = vmatprep.subr.mxu0 0.0
      %306 = vmatpush1.msra.mxu0 0.0
      %307 = vmatprep.subr.mxu0 0.0
      %308 = vmatpush1.msra.mxu0 0.0
      %309 = vmatprep.subr.mxu0 0.0
      %310 = vmatpush1.msra.mxu0 0.0
      %311 = vmatprep.subr.mxu0 0.0
      %312 = vmatpush1.msra.mxu0 0.0
      %313 = vmatprep.subr.mxu0 0.0
      %314 = vmatpush1.msra.mxu0 0.0
      %315 = vmatprep.subr.mxu0 0.0
      %316 = vmatpush1.msra.mxu0 0.0
      %317 = vmatprep.subr.mxu0 0.0
      %318 = vmatpush1.msra.mxu0 0.0
      %319 = vmatprep.subr.mxu0 0.0
      %320 = vmatpush1.msra.mxu0 0.0
      %321 = vmatprep.subr.mxu0 %v283
      %322 = vmatpush1.msra.mxu0 %v282
      %323 = vmatprep.subr.mxu0 %v279
      %324 = vmatpush1.msra.mxu0 %v278
      %325 = vmatprep.subr.mxu0 %v275
      %326 = vmatpush1.msra.mxu0 %v274
      %327 = vmatprep.subr.mxu0 0.0
      %328 = vmatpush2.msra.mxu0 0.0
      %329 = vmatprep.subr.mxu0 0.0
      %330 = vmatpush2.msra.mxu0 0.0
      %331 = vmatprep.subr.mxu0 0.0
      %332 = vmatpush2.msra.mxu0 0.0
      %333 = vmatprep.subr.mxu0 0.0
      %334 = vmatpush2.msra.mxu0 0.0
      %335 = vmatprep.subr.mxu0 0.0
      %336 = vmatpush2.msra.mxu0 0.0
      %337 = vmatprep.subr.mxu0 0.0
      %338 = vmatpush2.msra.mxu0 0.0
      %339 = vmatprep.subr.mxu0 0.0
      %340 = vmatpush2.msra.mxu0 0.0
      %341 = vmatprep.subr.mxu0 0.0
      %342 = vmatpush2.msra.mxu0 0.0
      %343 = vmatprep.subr.mxu0 0.0
      %344 = vmatpush2.msra.mxu0 0.0
      %345 = vmatprep.subr.mxu0 0.0
      %346 = vmatpush2.msra.mxu0 0.0
      %347 = vmatprep.subr.mxu0 0.0
      %348 = vmatpush2.msra.mxu0 0.0
      %349 = vmatprep.subr.mxu0 0.0
      %350 = vmatpush2.msra.mxu0 0.0
      %351 = vmatprep.subr.mxu0 0.0
      %352 = vmatpush2.msra.mxu0 0.0
      %353 = vmatprep.subr.mxu0 0.0
      %354 = vmatpush2.msra.mxu0 0.0
      %355 = vmatprep.subr.mxu0 0.0
      %356 = vmatpush2.msra.mxu0 0.0
      %357 = vmatprep.subr.mxu0 0.0
      %358 = vmatpush2.msra.mxu0 0.0
      %359 = vmatprep.mubr.f32.mxu0 0.0
      %360 = vmatmul.mubr.f32.gmra.mxu0 %v290
      %v361 = vpop.f32.mrf.mxu0
      %v362 = vadd.f32 0.0, %v361
      %v363 = vpop.f32.mrf.mxu0
      %v364 = vadd.f32 0.0, %v363
      %365 = vmatprep.mubr.f32.mxu0 0.0
      %366 = vmatmul.mubr.f32.gmra.mxu0 %v293
      %v367 = vpop.f32.mrf.mxu0
      %v368 = vadd.f32 0.0, %v367
      %v369 = vpop.f32.mrf.mxu0
      %v370 = vadd.f32 0.0, %v369
      %371 = vdwg.mxu0
      %372 = vmatprep.subr.mxu0 0.0
      %373 = vmatpush1.msra.mxu0 0.0
      %374 = vmatprep.subr.mxu0 0.0
      %375 = vmatpush1.msra.mxu0 0.0
      %376 = vmatprep.subr.mxu0 0.0
      %377 = vmatpush1.msra.mxu0 0.0
      %378 = vmatprep.subr.mxu0 0.0
      %379 = vmatpush1.msra.mxu0 0.0
      %380 = vmatprep.subr.mxu0 0.0
      %381 = vmatpush1.msra.mxu0 0.0
      %382 = vmatprep.subr.mxu0 0.0
      %383 = vmatpush1.msra.mxu0 0.0
      %384 = vmatprep.subr.mxu0 0.0
      %385 = vmatpush1.msra.mxu0 0.0
      %386 = vmatprep.subr.mxu0 0.0
      %387 = vmatpush1.msra.mxu0 0.0
      %388 = vmatprep.subr.mxu0 0.0
      %389 = vmatpush1.msra.mxu0 0.0
      %390 = vmatprep.subr.mxu0 0.0
      %391 = vmatpush1.msra.mxu0 0.0
      %392 = vmatprep.subr.mxu0 0.0
      %393 = vmatpush1.msra.mxu0 0.0
      %394 = vmatprep.subr.mxu0 0.0
      %395 = vmatpush1.msra.mxu0 0.0
      %396 = vmatprep.subr.mxu0 0.0
      %397 = vmatpush1.msra.mxu0 0.0
      %398 = vmatprep.subr.mxu0 %v285
      %399 = vmatpush1.msra.mxu0 %v284
      %400 = vmatprep.subr.mxu0 %v281
      %401 = vmatpush1.msra.mxu0 %v280
      %402 = vmatprep.subr.mxu0 %v277
      %403 = vmatpush1.msra.mxu0 %v276
      %404 = vmatprep.subr.mxu0 0.0
      %405 = vmatpush2.msra.mxu0 0.0
      %406 = vmatprep.subr.mxu0 0.0
      %407 = vmatpush2.msra.mxu0 0.0
      %408 = vmatprep.subr.mxu0 0.0
      %409 = vmatpush2.msra.mxu0 0.0
      %410 = vmatprep.subr.mxu0 0.0
      %411 = vmatpush2.msra.mxu0 0.0
      %412 = vmatprep.subr.mxu0 0.0
      %413 = vmatpush2.msra.mxu0 0.0
      %414 = vmatprep.subr.mxu0 0.0
      %415 = vmatpush2.msra.mxu0 0.0
      %416 = vmatprep.subr.mxu0 0.0
      %417 = vmatpush2.msra.mxu0 0.0
      %418 = vmatprep.subr.mxu0 0.0
      %419 = vmatpush2.msra.mxu0 0.0
      %420 = vmatprep.subr.mxu0 0.0
      %421 = vmatpush2.msra.mxu0 0.0
      %422 = vmatprep.subr.mxu0 0.0
      %423 = vmatpush2.msra.mxu0 0.0
      %424 = vmatprep.subr.mxu0 0.0
      %425 = vmatpush2.msra.mxu0 0.0
      %426 = vmatprep.subr.mxu0 0.0
      %427 = vmatpush2.msra.mxu0 0.0
      %428 = vmatprep.subr.mxu0 0.0
      %429 = vmatpush2.msra.mxu0 0.0
      %430 = vmatprep.subr.mxu0 0.0
      %431 = vmatpush2.msra.mxu0 0.0
      %432 = vmatprep.subr.mxu0 0.0
      %433 = vmatpush2.msra.mxu0 0.0
      %434 = vmatprep.subr.mxu0 0.0
      %435 = vmatpush2.msra.mxu0 0.0
      %436 = vmatprep.mubr.f32.mxu0 0.0
      %437 = vmatmul.mubr.f32.gmra.mxu0 %v290
      %v438 = vpop.f32.mrf.mxu0
      %v439 = vadd.f32 0.0, %v438
      %v440 = vpop.f32.mrf.mxu0
      %v441 = vadd.f32 0.0, %v440
      %442 = vmatprep.mubr.f32.mxu0 0.0
      %443 = vmatmul.mubr.f32.gmra.mxu0 %v293
      %v444 = vpop.f32.mrf.mxu0
      %v445 = vadd.f32 0.0, %v444
      %v446 = vpop.f32.mrf.mxu0
      %v447 = vadd.f32 0.0, %v446
      %448 = vdwg.mxu0
      %v451 = vlaneseq
      %v452 = vshrl.u32 %v451, 7
      %v453 = vsub.s32 0, %v452
      %v454 = vrot.slane %v286, %v453
      %v455 = vlaneseq
      %v456 = vshrl.u32 %v455, 7
      %v457 = vsub.s32 4, %v456
      %v458 = vrot.slane %v286, %v457
      %v459 = vlaneseq
      %v460 = vshrl.u32 %v459, 7
      %v461 = vsub.s32 0, %v460
      %v462 = vrot.slane %v287, %v461
      %v463 = vlaneseq
      %v464 = vshrl.u32 %v463, 7
      %v465 = vsub.s32 4, %v464
      %v466 = vrot.slane %v287, %v465
      %v471 = vmul.f32 %v362, %v454
      %v472 = vmul.f32 %v364, %v458
      %v473 = vmul.f32 %v439, %v462
      %v474 = vmul.f32 %v441, %v466
      %v475 = vlaneseq
      %v476 = vshrl.u32 %v475, 7
      %v477 = vsub.s32 1, %v476
      %v478 = vrot.slane %v286, %v477
      %v479 = vlaneseq
      %v480 = vshrl.u32 %v479, 7
      %v481 = vsub.s32 5, %v480
      %v482 = vrot.slane %v286, %v481
      %v483 = vlaneseq
      %v484 = vshrl.u32 %v483, 7
      %v485 = vsub.s32 1, %v484
      %v486 = vrot.slane %v287, %v485
      %v487 = vlaneseq
      %v488 = vshrl.u32 %v487, 7
      %v489 = vsub.s32 5, %v488
      %v490 = vrot.slane %v287, %v489
      %v495 = vmul.f32 %v362, %v478
      %v496 = vmul.f32 %v364, %v482
      %v497 = vmul.f32 %v439, %v486
      %v498 = vmul.f32 %v441, %v490
      %v503 = vrot.slane %v495, 1
      %v504 = vrot.slane %v496, 1
      %v505 = vrot.slane %v497, 1
      %v506 = vrot.slane %v498, 1
      %v511 = vadd.f32 %v471, %v503
      %v512 = vadd.f32 %v472, %v504
      %v513 = vadd.f32 %v473, %v505
      %v514 = vadd.f32 %v474, %v506
      %v515 = vlaneseq
      %v516 = vshrl.u32 %v515, 7
      %v517 = vsub.s32 2, %v516
      %v518 = vrot.slane %v286, %v517
      %v519 = vlaneseq
      %v520 = vshrl.u32 %v519, 7
      %v521 = vsub.s32 6, %v520
      %v522 = vrot.slane %v286, %v521
      %v523 = vlaneseq
      %v524 = vshrl.u32 %v523, 7
      %v525 = vsub.s32 2, %v524
      %v526 = vrot.slane %v287, %v525
      %v527 = vlaneseq
      %v528 = vshrl.u32 %v527, 7
      %v529 = vsub.s32 6, %v528
      %v530 = vrot.slane %v287, %v529
      %v535 = vmul.f32 %v362, %v518
      %v536 = vmul.f32 %v364, %v522
      %v537 = vmul.f32 %v439, %v526
      %v538 = vmul.f32 %v441, %v530
      %v543 = vrot.slane %v535, 2
      %v544 = vrot.slane %v536, 2
      %v545 = vrot.slane %v537, 2
      %v546 = vrot.slane %v538, 2
      %v551 = vadd.f32 %v511, %v543
      %v552 = vadd.f32 %v512, %v544
      %v553 = vadd.f32 %v513, %v545
      %v554 = vadd.f32 %v514, %v546
      %v559 = vcombine.low %v551, %v552
      %v560 = vcombine.low %v553, %v554
      %v562 = vunpack.c.l.s4 1966171168
      %v563 = vunpack.c.0.s8 %v562
      %v564 = vlaneseq
      %v565 = vshrl.u32 %v564, 7
      %v566 = vsub.s32 %v563, %v565
      %v567 = vrot.slane %v559, %v566
      %v569 = vunpack.c.l.s4 1966171168
      %v570 = vunpack.c.0.s8 %v569
      %v571 = vlaneseq
      %v572 = vshrl.u32 %v571, 7
      %v573 = vsub.s32 %v570, %v572
      %v574 = vrot.slane %v560, %v573
      %v575 = vcombine.low %v567, %v574
      %v577 = vunpack.c.l.s4 1966171168
      %v578 = vunpack.c.0.s8 %v577
      %v579 = vlaneseq
      %v580 = vshrl.u32 %v579, 7
      %v581 = vsub.s32 %v578, %v580
      %v582 = vrot.slane %v575, %v581
      %v584 = vlaneseq
      %vm585 = vcmp.ge.s32.totalorder %v584, 0
      %vm586 = vcmp.lt.s32.totalorder %v584, 512
      %vm587 = vmand %vm585, %vm586
      %588 = vst.msk [vmem:[%s264] ss:$4 sm:$0xf] %vm587, %v582
      %v589 = vcombine.high %v567, %v574
      %v591 = vunpack.c.l.s4 1966171168
      %v592 = vunpack.c.0.s8 %v591
      %v593 = vlaneseq
      %v594 = vshrl.u32 %v593, 7
      %v595 = vsub.s32 %v592, %v594
      %v596 = vrot.slane %v589, %v595
      %v597 = vcombine.high %v596, %v596
      %s599 = scalar_lea.vmem %s264, 1
      %600 = vst.msk [vmem:[%s599] ss:$4 sm:$0xf] %vm587, %v597
      %v601 = vmul.f32 %v368, %v518
      %v602 = vmul.f32 %v370, %v522
      %v603 = vmul.f32 %v445, %v526
      %v604 = vmul.f32 %v447, %v530
      %v609 = vrot.slane %v601, 2
      %v610 = vrot.slane %v602, 2
      %v611 = vrot.slane %v603, 2
      %v612 = vrot.slane %v604, 2
      %v617 = vadd.f32 %v511, %v609
      %v618 = vadd.f32 %v512, %v610
      %v619 = vadd.f32 %v513, %v611
      %v620 = vadd.f32 %v514, %v612
      %v625 = vcombine.high %v617, %v618
      %v626 = vcombine.high %v619, %v620
      %v628 = vunpack.c.l.s4 1966171168
      %v629 = vunpack.c.0.s8 %v628
      %v630 = vlaneseq
      %v631 = vshrl.u32 %v630, 7
      %v632 = vsub.s32 %v629, %v631
      %v633 = vrot.slane %v625, %v632
      %v635 = vunpack.c.l.s4 1966171168
      %v636 = vunpack.c.0.s8 %v635
      %v637 = vlaneseq
      %v638 = vshrl.u32 %v637, 7
      %v639 = vsub.s32 %v636, %v638
      %v640 = vrot.slane %v626, %v639
      %v641 = vcombine.low %v633, %v640
      %v643 = vunpack.c.l.s4 1966171168
      %v644 = vunpack.c.0.s8 %v643
      %v645 = vlaneseq
      %v646 = vshrl.u32 %v645, 7
      %v647 = vsub.s32 %v644, %v646
      %v648 = vrot.slane %v641, %v647
      %v649 = vcombine.high %v648, %v648
      %s651 = scalar_lea.vmem %s264, 2
      %652 = vst.msk [vmem:[%s651] ss:$4 sm:$0xf] %vm587, %v649
      %s653 = smul.u32 4, %s19
      %p654 = scmp.lt.s32.totalorder %s18, 1
      %s655 = scalar_select %p654, %s18, 1
      %p656 = scmp.lt.s32.totalorder %s653, 3
      %s657 = scalar_select %p656, %s653, 3
      %s658 = smul.addr %s655, 4
      %s659 = sadd.s32 %s657, %s658
      %s660 = smul.addr %s659, 4
      %s661 = scalar_lea.vmem %s3, %s660
      // Predicated region
      $region33: #{inv_skin_rotation_only_forward.1} parent=31 // pred_check
        %p662 = pneg %p128
      $region34: #{inv_skin_rotation_only_forward.1} parent=31 // pred_check_branch
        %664 = sbr.rel (%p662) target = $region36
      $region35: #{inv_skin_rotation_only_forward.1} parent=31 // pred_region
        %s665 = smul.u32 4, %s19
      $region36: #{inv_skin_rotation_only_forward.1} parent=31 // pred_fallthru
        _
    $region32: #{inv_skin_rotation_only_forward.1} parent=5 // pred_fallthru
      _
    %p666 = scmp.le.s32.totalorder 2, %s9
    // Predicated region
    $region37: #{inv_skin_rotation_only_forward.1} parent=5 // pred_check
      %p667 = pneg %p666
    $region38: #{inv_skin_rotation_only_forward.1} parent=5 // pred_check_branch
      %669 = sbr.rel (%p667) target = $region40
    $region39: #{inv_skin_rotation_only_forward.1} parent=5 // pred_region
      %s670 = ssub.s32 %s9, 2
      // Predicated region
      $region41: #{inv_skin_rotation_only_forward.1} parent=39 // pred_check
        %p671 = pneg %p134
      $region42: #{inv_skin_rotation_only_forward.1} parent=39 // pred_check_branch
        %673 = sbr.rel (%p671) target = $region44
      $region43: #{inv_skin_rotation_only_forward.1} parent=39 // pred_region
        %s674 = smul.u32 4, %s21
        %p675 = scmp.lt.s32.totalorder %s20, 1
        %s676 = scalar_select %p675, %s20, 1
        %p677 = scmp.lt.s32.totalorder %s674, 3
        %s678 = scalar_select %p677, %s674, 3
        %s679 = smul.addr %s676, 4
        %s680 = sadd.s32 %s678, %s679
        %s681 = smul.addr %s680, 4
        %s682 = scalar_lea.vmem %s3, %s681
      $region44: #{inv_skin_rotation_only_forward.1} parent=39 // pred_fallthru
        _
    $region40: #{inv_skin_rotation_only_forward.1} parent=5 // pred_fallthru
      _
  $region6: #{inv_skin_rotation_only_forward.1} parent=0 // loop_footer
    %s13 = sadd.s32 1, %s9
  $region7: #{inv_skin_rotation_only_forward.1} parent=0 // loop_footer_branch
    %8 = sbr.rel target = $region3
  $region8: #{inv_skin_rotation_only_forward.1} parent=0 // loop_exit
    _

</llo_original>
